<compile_context>
chip_gen: v7x
topology: tpu7x:2x2x1
jax: 0.10.0
libtpu: 0.0.40
codegen_flags: <defaults>
</compile_context>

<pallas_src>
import functools

import jax
import jax.numpy as jnp
from jax.experimental import pallas as pl
from jax.experimental.pallas import tpu as pltpu


def _single_block_kernel(x_ref, o_ref, *, lambda1, lambda2):
    """Whole slice in one block: both norms + sqrt + combine, scalar to SMEM."""
    x = x_ref[...].astype(jnp.float32)          # (rows, LANE)
    l1 = jnp.sum(jnp.abs(x))
    l2 = jnp.sqrt(jnp.sum(x * x))
    o_ref[0, 0] = lambda1 * l1 + lambda2 * l2


def _partials_kernel(x_ref, l1_ref, sq_ref, *, rows, tr, needs_mask):
    """Per-block (sum|x|, sum x^2) partials; no cross-step state -> parallel."""
    j = pl.program_id(0)
    x = x_ref[...].astype(jnp.float32)          # (TR, LANE)
    if needs_mask:
        # cdiv grid: mask the (undefined) row tail of the last block.  Applied
        # to every block for simplicity — pure VPU filler in a mem-bound loop.
        rid = jax.lax.broadcasted_iota(jnp.int32, x.shape, 0)
        x = jnp.where(rid < rows - j * tr, x, 0.0)
    l1_ref[...] = jnp.sum(jnp.abs(x)).reshape(1, 1, 1)
    sq_ref[...] = jnp.sum(x * x).reshape(1, 1, 1)


def _lane_dense_view(filt):
    """Present filter as (leading, rows, LANE) with LANE % 128 == 0 such that
    index 0 on the leading axis is exactly filter[0] (plus zero padding in the
    non-divisible fallback)."""
    leading = filt.shape[0]
    n = 1
    for d in filt.shape[1:]:
        n *= d
    for lane in (1024, 512, 256, 128):
        if n % lane == 0:
            # Pure reshape of the contiguous array: no copy, no slice.
            return filt.reshape(leading, n // lane, lane), n // lane, lane
    # Awkward size: flatten + zero-pad just filter[0].
    lane = 128 if n < (1 << 16) else 512
    rows = pl.cdiv(n, lane)
    flat = jnp.pad(filt[0].reshape(-1), (0, rows * lane - n))
    return flat.reshape(1, rows, lane), rows, lane


def elastic_net_forward(filt, lambda1, lambda2=0.0001, *,
                        block_target_bytes=4 << 20):
    """Pallas equivalent of elastic_net(lambda1, lambda2)(filt)."""
    lambda1 = float(lambda1)
    lambda2 = float(lambda2)

    x3d, rows, lane = _lane_dense_view(filt)
    itemsize = jnp.dtype(filt.dtype).itemsize

    # ~4 MiB of real (input-dtype) bytes per block, sublane-aligned.
    tr = max(8, (block_target_bytes // (lane * itemsize)) // 8 * 8)

    if tr >= rows:
        # ---------- single-block fast path ----------
        vmem_limit = int(min(32 << 20,
                             max(16 << 20,
                                 2 * rows * lane * (itemsize + 4) + (2 << 20))))
        out = pl.pallas_call(
            functools.partial(_single_block_kernel,
                              lambda1=lambda1, lambda2=lambda2),
            out_shape=jax.ShapeDtypeStruct((1, 1), jnp.float32),
            grid=(1,),
            in_specs=[pl.BlockSpec((pl.Squeezed(), rows, lane),
                                   lambda j: (0, 0, 0))],
            out_specs=pl.BlockSpec(memory_space=pltpu.SMEM),
            compiler_params=pltpu.CompilerParams(
                dimension_semantics=("arbitrary",),
                vmem_limit_bytes=vmem_limit,
            ),
        )(x3d)
        return out[0, 0]

    # ---------- tiled streaming path ----------
    num_blocks = pl.cdiv(rows, tr)
    needs_mask = (rows % tr) != 0
    vmem_limit = int(min(32 << 20,
                         max(16 << 20,
                             2 * tr * lane * (itemsize + 4) + (2 << 20))))
    l1_parts, sq_parts = pl.pallas_call(
        functools.partial(_partials_kernel,
                          rows=rows, tr=tr, needs_mask=needs_mask),
        out_shape=(
            jax.ShapeDtypeStruct((num_blocks, 1, 1), jnp.float32),
            jax.ShapeDtypeStruct((num_blocks, 1, 1), jnp.float32),
        ),
        grid=(num_blocks,),
        in_specs=[pl.BlockSpec((pl.Squeezed(), tr, lane),
                               lambda j: (0, j, 0))],
        out_specs=(
            pl.BlockSpec((1, 1, 1), lambda j: (j, 0, 0)),
            pl.BlockSpec((1, 1, 1), lambda j: (j, 0, 0)),
        ),
        compiler_params=pltpu.CompilerParams(
            # Independent per-block partials -> parallel (v7x megacore: 2 TCs).
            dimension_semantics=("parallel",),
            vmem_limit_bytes=vmem_limit,
        ),
    )(x3d)
    l1 = jnp.sum(l1_parts)
    l2 = jnp.sqrt(jnp.sum(sq_parts))
    return lambda1 * l1 + lambda2 * l2


if __name__ == "__main__":
    key = jax.random.PRNGKey(0)
    lambda1, lambda2 = 0.01, 0.0001

    def reference(f):
        x0 = f[0].astype(jnp.float32)
        return lambda1 * jnp.sum(jnp.abs(x0)) + lambda2 * jnp.sqrt(jnp.sum(x0 * x0))

    k1, k2, k3 = jax.random.split(key, 3)

    # 1) Conv-filter-like tensor (single-block fast path, lane-divisible).
    filt1 = jax.random.normal(k1, (4, 4, 16, 16), dtype=jnp.float32)
    r1 = jax.block_until_ready(elastic_net_forward(filt1, lambda1, lambda2))
    assert jnp.allclose(r1, reference(filt1), rtol=1e-5, atol=1e-5), (r1, reference(filt1))

    # 2) Awkward size (pad fallback) + tiny block target: exercises the tiled
    #    path with a masked tail block.
    filt2 = jax.random.normal(k2, (2, 5, 24, 24), dtype=jnp.float32)
    r2 = jax.block_until_ready(
        elastic_net_forward(filt2, lambda1, lambda2, block_target_bytes=4096))
    assert jnp.allclose(r2, reference(filt2), rtol=1e-5, atol=1e-5), (r2, reference(filt2))

    # 3) Lane-divisible multi-block path (no mask, no pad), bf16 input with
    #    in-kernel f32 accumulation.
    filt3 = jax.random.normal(k3, (2, 16, 32, 32), dtype=jnp.bfloat16)
    r3 = jax.block_until_ready(
        elastic_net_forward(filt3, lambda1, lambda2, block_target_bytes=4096))
    assert jnp.allclose(r3, reference(filt3), rtol=1e-3, atol=1e-3), (r3, reference(filt3))

    print("KERNEL_OK")
</pallas_src>

<mosaic_0001>
module attributes {stable_mosaic.version = 11 : i64} {
  func.func @_single_block_kernel(%arg0: i32, %arg1: memref<1x1x1024xf32, #tpu.memory_space<vmem>>, %arg2: memref<1x1xf32, #tpu.memory_space<smem>>) attributes {dimension_semantics = [#tpu.dimension_semantics<arbitrary>], iteration_bounds = array<i64: 1>, scalar_prefetch = 0 : i64, scratch_operands = 0 : i64, tpu.core_type = #tpu.core_type<tc>, window_params = [{transform_indices = @transform_0, window_bounds = array<i64: 1, 1, 1024>}, {transform_indices = @transform_1, window_bounds = array<i64: 1, 1>}]} {
    %c0 = arith.constant 0 : index
    %c0_0 = arith.constant 0 : index
    %c0_1 = arith.constant 0 : index
    %0 = vector.load %arg1[%c0, %c0_0, %c0_1] : memref<1x1x1024xf32, #tpu.memory_space<vmem>>, vector<1x1x1024xf32>
    %1 = vector.shape_cast %0 : vector<1x1x1024xf32> to vector<1x1024xf32>
    %2 = math.absf %1 : vector<1x1024xf32>
    %3 = vector.shape_cast %2 : vector<1x1024xf32> to vector<1x1x1024xf32>
    %cst = arith.constant dense<0.000000e+00> : vector<1xf32>
    %4 = vector.multi_reduction <add>, %3, %cst [1, 2] : vector<1x1x1024xf32> to vector<1xf32>
    %5 = vector.shape_cast %4 : vector<1xf32> to vector<1x1x1xf32>
    %6 = vector.extract %5[0, 0, 0] : f32 from vector<1x1x1xf32>
    %7 = arith.mulf %1, %1 : vector<1x1024xf32>
    %8 = vector.shape_cast %7 : vector<1x1024xf32> to vector<1x1x1024xf32>
    %cst_2 = arith.constant dense<0.000000e+00> : vector<1xf32>
    %9 = vector.multi_reduction <add>, %8, %cst_2 [1, 2] : vector<1x1x1024xf32> to vector<1xf32>
    %10 = vector.shape_cast %9 : vector<1xf32> to vector<1x1x1xf32>
    %11 = vector.extract %10[0, 0, 0] : f32 from vector<1x1x1xf32>
    %12 = math.sqrt %11 : f32
    %cst_3 = arith.constant 0.00999999977 : f32
    %13 = arith.mulf %cst_3, %6 : f32
    %cst_4 = arith.constant 9.99999974E-5 : f32
    %14 = arith.mulf %cst_4, %12 : f32
    %15 = arith.addf %13, %14 : f32
    %c0_5 = arith.constant 0 : index
    %c0_6 = arith.constant 0 : index
    %16 = memref.load %arg2[%c0_5, %c0_6] : memref<1x1xf32, #tpu.memory_space<smem>>
    memref.store %15, %arg2[%c0_5, %c0_6] : memref<1x1xf32, #tpu.memory_space<smem>>
    return
  }
  func.func @transform_0(%arg0: i32) -> (i32, i32, i32) {
    %c0_i32 = arith.constant 0 : i32
    %c0_i32_0 = arith.constant 0 : i32
    %c0_i32_1 = arith.constant 0 : i32
    %c0_i32_2 = arith.constant 0 : i32
    return %c0_i32, %c0_i32_0, %c0_i32_1 : i32, i32, i32
  }
  func.func @transform_1(%arg0: i32) -> (i32, i32) {
    %c0_i32 = arith.constant 0 : i32
    %c0_i32_0 = arith.constant 0 : i32
    %c0_i32_1 = arith.constant 0 : i32
    return %c0_i32, %c0_i32_0 : i32, i32
  }
}

</mosaic_0001>

<llo_original>
// kernel: tpu_custom_call.1
$region0: #{tpu_custom_call.1}
  #allocation0 [shape = 'u32[]', space=smem, size = 0x4, offset = 0x4, fixed_abs, tag = 'smem constant byte address 0x4 - core index']
  #allocation1 [shape = 'u32[144,128]{1,0:T(1,128)}', space=vmem, size = 0x12000, scoped, tag = 'internal scratch']
  %s0 = inlined_call_operand.hbm [shape: f32[4,1,1024], index: 0, kind: input, shape index: {}]
  %s1 = inlined_call_operand.hbm [shape: f32[1,1], index: 1, kind: output, shape index: {}]
  %s2 = sld [smem:[#allocation0]]
  $region18: #{tpu_custom_call.1} parent=0
    _
  %s4 = ssub.s32 1, %s2
  %s5 = scalar_select 0, %s4, %s2
  $region1: #{tpu_custom_call.1} parent=0
    #allocation2 [shape = 'u8[4096]{0}', space=vmem, size = 0x1000, scoped, tag = 'input window, operand 0, single buffered']
    #allocation3 [shape = 's32[1]{0}', space=sflag, size = 0x4, scoped, tag = 'scoped memory for tpu_custom_call.1']
    #allocation4 [shape = 's32[1]{0}', space=sflag, size = 0x4, scoped, tag = 'scoped memory for tpu_custom_call.1']
    #allocation5 [shape = 'u8[512]{0}', space=smem, size = 0x200, scoped, tag = 'output window, operand 0, single buffered']
    %6 = vsyncpa [#allocation3], 0
    %7 = vsyncpa [#allocation4], 0
    // Predicated region
    $region2: #{tpu_custom_call.1} parent=1 // pred_check
      _
    $region3: #{tpu_custom_call.1} parent=1 // pred_check_branch
      %9 = sbr.rel (0) target = $region5
    $region4: #{tpu_custom_call.1} parent=1 // pred_region
      %s11 = ssub.s32 128, 128
      %12 = vsyncadd [#allocation3], %s11
      %s14 = sshll.u32 [#allocation2], 4
      %s15 = int_to_ptr.vmem [resolvable:$true] %s14
      %17 = dma.hbm_to_vmem [thread:$0]  %s0, 128, %s15, [#allocation3]
    $region5: #{tpu_custom_call.1} parent=1 // pred_fallthru
      _
    // Predicated region
    $region6: #{tpu_custom_call.1} parent=1 // pred_check
      _
    $region7: #{tpu_custom_call.1} parent=1 // pred_check_branch
      %19 = sbr.rel (0) target = $region9
    $region8: #{tpu_custom_call.1} parent=1 // pred_region
      %20 = dma.done [#allocation3], 128
    $region9: #{tpu_custom_call.1} parent=1 // pred_fallthru
      _
    %v21 = vld [vmem:[#allocation2] sm:$0xff]
    %v22 = vand.u32 2147483647, %v21
    %v24 = vlaneseq
    %v25 = vshrl.u32 %v24, 7
    %v26 = vsub.s32 0, %v25
    %v27 = vrot.slane %v22, %v26
    %v28 = vlaneseq
    %v29 = vshrl.u32 %v28, 7
    %v30 = vsub.s32 1, %v29
    %v31 = vrot.slane %v22, %v30
    %v32 = vlaneseq
    %v33 = vshrl.u32 %v32, 7
    %v34 = vsub.s32 2, %v33
    %v35 = vrot.slane %v22, %v34
    %v36 = vlaneseq
    %v37 = vshrl.u32 %v36, 7
    %v38 = vsub.s32 3, %v37
    %v39 = vrot.slane %v22, %v38
    %v40 = vlaneseq
    %v41 = vshrl.u32 %v40, 7
    %v42 = vsub.s32 4, %v41
    %v43 = vrot.slane %v22, %v42
    %v44 = vlaneseq
    %v45 = vshrl.u32 %v44, 7
    %v46 = vsub.s32 5, %v45
    %v47 = vrot.slane %v22, %v46
    %v48 = vlaneseq
    %v49 = vshrl.u32 %v48, 7
    %v50 = vsub.s32 6, %v49
    %v51 = vrot.slane %v22, %v50
    %v52 = vlaneseq
    %v53 = vshrl.u32 %v52, 7
    %v54 = vsub.s32 7, %v53
    %v55 = vrot.slane %v22, %v54
    %vm64 = vcmask 1040384
    %v65 = vsel %vm64, %v27, 0.0
    %v66 = vsel %vm64, %v31, 0.0
    %v67 = vadd.f32 %v65, %v66
    %v68 = vsel %vm64, %v35, 0.0
    %v69 = vadd.f32 %v67, %v68
    %v70 = vsel %vm64, %v39, 0.0
    %v71 = vadd.f32 %v69, %v70
    %v72 = vsel %vm64, %v43, 0.0
    %v73 = vadd.f32 %v71, %v72
    %v74 = vsel %vm64, %v47, 0.0
    %v75 = vadd.f32 %v73, %v74
    %v76 = vsel %vm64, %v51, 0.0
    %v77 = vadd.f32 %v75, %v76
    %v78 = vsel %vm64, %v55, 0.0
    %v79 = vadd.f32 %v77, %v78
    %80 = vadd.xlane.f32.xlu0 %v79
    %v81 = vpop.xlane.xlu0 %80
    %v82 = vrot.slane %v81, 4
    %v83 = vadd.f32 %v81, %v82
    %v84 = vrot.slane %v83, 2
    %v85 = vadd.f32 %v83, %v84
    %v86 = vrot.slane %v85, 1
    %v87 = vadd.f32 %v85, %v86
    %s88 = vtos %v87
    %v89 = vmul.f32 %v21, %v21
    %v91 = vlaneseq
    %v92 = vshrl.u32 %v91, 7
    %v93 = vsub.s32 0, %v92
    %v94 = vrot.slane %v89, %v93
    %v95 = vlaneseq
    %v96 = vshrl.u32 %v95, 7
    %v97 = vsub.s32 1, %v96
    %v98 = vrot.slane %v89, %v97
    %v99 = vlaneseq
    %v100 = vshrl.u32 %v99, 7
    %v101 = vsub.s32 2, %v100
    %v102 = vrot.slane %v89, %v101
    %v103 = vlaneseq
    %v104 = vshrl.u32 %v103, 7
    %v105 = vsub.s32 3, %v104
    %v106 = vrot.slane %v89, %v105
    %v107 = vlaneseq
    %v108 = vshrl.u32 %v107, 7
    %v109 = vsub.s32 4, %v108
    %v110 = vrot.slane %v89, %v109
    %v111 = vlaneseq
    %v112 = vshrl.u32 %v111, 7
    %v113 = vsub.s32 5, %v112
    %v114 = vrot.slane %v89, %v113
    %v115 = vlaneseq
    %v116 = vshrl.u32 %v115, 7
    %v117 = vsub.s32 6, %v116
    %v118 = vrot.slane %v89, %v117
    %v119 = vlaneseq
    %v120 = vshrl.u32 %v119, 7
    %v121 = vsub.s32 7, %v120
    %v122 = vrot.slane %v89, %v121
    %v131 = vsel %vm64, %v94, 0.0
    %v132 = vsel %vm64, %v98, 0.0
    %v133 = vadd.f32 %v131, %v132
    %v134 = vsel %vm64, %v102, 0.0
    %v135 = vadd.f32 %v133, %v134
    %v136 = vsel %vm64, %v106, 0.0
    %v137 = vadd.f32 %v135, %v136
    %v138 = vsel %vm64, %v110, 0.0
    %v139 = vadd.f32 %v137, %v138
    %v140 = vsel %vm64, %v114, 0.0
    %v141 = vadd.f32 %v139, %v140
    %v142 = vsel %vm64, %v118, 0.0
    %v143 = vadd.f32 %v141, %v142
    %v144 = vsel %vm64, %v122, 0.0
    %v145 = vadd.f32 %v143, %v144
    %146 = vadd.xlane.f32.xlu0 %v145
    %v147 = vpop.xlane.xlu0 %146
    %v148 = vrot.slane %v147, 4
    %v149 = vadd.f32 %v147, %v148
    %v150 = vrot.slane %v149, 2
    %v151 = vadd.f32 %v149, %v150
    %v152 = vrot.slane %v151, 1
    %v153 = vadd.f32 %v151, %v152
    %s154 = vtos %v153
    %v155 = vstv %s154
    %v156 = vrsqrt.pop %v155
    %v157 = vmul.f32 %v155, %v156
    %vm158 = vcmp.eq.f32.partialorder %v155, inf
    %v159 = vsel %vm158, %v155, %v157
    %vm160 = vcmp.eq.f32.partialorder %v155, 0.0
    %v161 = vand.u32 %v155, 2147483648
    %v162 = vsel %vm160, %v161, %v159
    %s163 = vtos %v162
    %s164 = smul.f32 %s88, 0.01
    %s165 = smul.f32 %s163, 0.0001
    %s166 = sadd.f32 %s164, %s165
    %s167 = scalar_lea.smem [#allocation5], 0
    %168 = sst [smem:[%s167]] %s166
    // Predicated region
    $region10: #{tpu_custom_call.1} parent=1 // pred_check
      _
    $region11: #{tpu_custom_call.1} parent=1 // pred_check_branch
      %170 = sbr.rel (0) target = $region13
    $region12: #{tpu_custom_call.1} parent=1 // pred_region
      %s172 = ssub.s32 16, 16
      %173 = vsyncadd [#allocation4], %s172
      %176 = dma.smem_to_hbm [#allocation5], 16, %s1, [#allocation4]
    $region13: #{tpu_custom_call.1} parent=1 // pred_fallthru
      _
    // Predicated region
    $region14: #{tpu_custom_call.1} parent=1 // pred_check
      _
    $region15: #{tpu_custom_call.1} parent=1 // pred_check_branch
      %178 = sbr.rel (0) target = $region17
    $region16: #{tpu_custom_call.1} parent=1 // pred_region
      %179 = dma.done [#allocation4], 16
    $region17: #{tpu_custom_call.1} parent=1 // pred_fallthru
      _
    %180 = sfence
    %181 = vsyncpa [#allocation3], 1
    %182 = vsyncpa [#allocation4], 1

</llo_original>
